<compile_context>
chip_gen: v5e
topology: v5e:2x2
jax: 0.10.0
libtpu: 0.0.40
codegen_flags: <defaults>
</compile_context>

<pallas_src>
import functools

import jax
import jax.numpy as jnp
from jax.experimental import pallas as pl
from jax.experimental.pallas import tpu as pltpu


def _attention_kernel(x_ref, wqkv_ref, wout_ref, bout_ref, o_ref, *,
                      heads, dim_head, scale):
    TB, n, dim = x_ref.shape                 # static python ints
    inner = heads * dim_head
    rows = TB * n

    # (TB, n, dim) -> (TB*n, dim): leading-dim collapse (minor dim unchanged, free).
    # bf16 MXU operand; accumulate in f32.
    x2d = x_ref[...].reshape(rows, dim).astype(jnp.bfloat16)

    wqkv = wqkv_ref[...]                     # (dim, 3*inner) bf16, VMEM-resident
    wout = wout_ref[...]                     # (inner, dim)    bf16, VMEM-resident

    # Single QKV projection for the whole slab (hot matmul #1).
    qkv = jnp.dot(x2d, wqkv, preferred_element_type=jnp.float32)   # (rows, 3*inner) f32

    acc = jnp.zeros((rows, dim), dtype=jnp.float32)
    for h in range(heads):                   # static unroll; heads is small
        s0, s1 = h * dim_head, (h + 1) * dim_head
        # (rows, dh) -> (TB, n, dh): leading-dim split (free). bf16 operands.
        qh = qkv[:, s0:s1].reshape(TB, n, dim_head).astype(jnp.bfloat16)
        kh = qkv[:, inner + s0:inner + s1].reshape(TB, n, dim_head).astype(jnp.bfloat16)
        vh = qkv[:, 2 * inner + s0:2 * inner + s1].reshape(TB, n, dim_head).astype(jnp.bfloat16)

        # Block-diagonal attention: TB (= b*p slices in this block) is a batch
        # dim, so different (b, p) slices never attend to each other. No mask.
        s = jnp.einsum('bqd,bkd->bqk', qh, kh,
                       preferred_element_type=jnp.float32) * scale   # (TB, n, n) f32

        # Numerically-stable softmax, all in f32 (exact reciprocal: cheap on a
        # (TB, n, 1) tensor and keeps parity with the PyTorch reference).
        s = s - jnp.max(s, axis=-1, keepdims=True)
        e = jnp.exp(s)
        attn = e * pl.reciprocal(jnp.sum(e, axis=-1, keepdims=True), approx=False)

        oh = jnp.einsum('bqk,bkd->bqd', attn.astype(jnp.bfloat16), vh,
                        preferred_element_type=jnp.float32)          # (TB, n, dh) f32

        # Fold the head merge into the output projection (no concat, no scratch):
        # concat_h(oh) @ W_out == sum_h oh @ W_out[h*dh:(h+1)*dh, :]
        acc = acc + jnp.dot(oh.reshape(rows, dim_head).astype(jnp.bfloat16),
                            wout[s0:s1, :],
                            preferred_element_type=jnp.float32)      # (rows, dim)

    acc = acc + bout_ref[...]                # to_out Linear bias, broadcast over rows

    # (TB*n, dim) -> (TB, n, dim): leading-dim split (free).
    o_ref[...] = acc.reshape(TB, n, dim).astype(o_ref.dtype)


def attention_pallas(x, w_qkv, w_out, b_out, *, heads, dim_head):
    """x: (b, p, n, dim); w_qkv: (dim, 3*heads*dim_head);
    w_out: (heads*dim_head, dim); b_out: (dim,)."""
    b, p, n, dim = x.shape
    inner = heads * dim_head
    scale = float(dim_head) ** -0.5

    B = b * p
    x_flat = x.reshape(B, n, dim)

    # Grid depth: 4-8 even steps (double-buffered DMA; both v7x TensorCores get
    # work). Deepen further if one step's working set would be large, sized
    # against v7x's tighter VMEM (64 MiB physical / 32 MiB default scoped).
    nblk = 2
    while nblk < min(B, 8):
        nblk *= 2

    def _step_bytes(tb):
        rows = tb * n
        return (4 * rows * dim * 4            # double-buffered in/out blocks (f32)
                + rows * 3 * inner * 4        # qkv intermediate (f32)
                + 4 * tb * n * n * 4)         # score/prob intermediates (f32)

    while _step_bytes((B + nblk - 1) // nblk) > 24 * 1024 * 1024 and nblk < B:
        nblk *= 2

    B_pad = ((B + nblk - 1) // nblk) * nblk
    TB = B_pad // nblk
    if B_pad != B:
        # Pad (rather than dropping to a 1-step grid): padded rows are all-zero,
        # softmax over zero scores is uniform (no NaNs) and the rows are sliced off.
        x_flat = jnp.pad(x_flat, ((0, B_pad - B), (0, 0), (0, 0)))

    # Weights resident in VMEM in bf16 (MXU-native, half the footprint).
    w_qkv_bf = w_qkv.astype(jnp.bfloat16)
    w_out_bf = w_out.astype(jnp.bfloat16)
    b_out_2d = b_out.reshape(1, dim).astype(jnp.float32)

    kernel = functools.partial(_attention_kernel,
                               heads=heads, dim_head=dim_head, scale=scale)

    out_flat = pl.pallas_call(
        kernel,
        out_shape=jax.ShapeDtypeStruct((B_pad, n, dim), x.dtype),
        grid_spec=pltpu.PrefetchScalarGridSpec(
            num_scalar_prefetch=0,
            grid=(nblk,),
            in_specs=[
                pl.BlockSpec((TB, n, dim), lambda i: (i, 0, 0)),       # x slab
                pl.BlockSpec((dim, 3 * inner), lambda i: (0, 0)),      # W_qkv (resident)
                pl.BlockSpec((inner, dim), lambda i: (0, 0)),          # W_out (resident)
                pl.BlockSpec((1, dim), lambda i: (0, 0)),              # b_out (resident)
            ],
            out_specs=pl.BlockSpec((TB, n, dim), lambda i: (i, 0, 0)),
        ),
        compiler_params=pltpu.CompilerParams(
            dimension_semantics=("parallel",),
            vmem_limit_bytes=48 * 1024 * 1024,
        ),
    )(x_flat, w_qkv_bf, w_out_bf, b_out_2d)

    return out_flat[:B].reshape(b, p, n, dim)


def attention_ref(x, w_qkv, w_out, b_out, *, heads, dim_head):
    """Pure-JAX (f32) reference mirroring the PyTorch forward."""
    b, p, n, dim = x.shape
    inner = heads * dim_head
    scale = float(dim_head) ** -0.5
    qkv = jnp.einsum("bpnd,de->bpne", x, w_qkv)
    q, k, v = jnp.split(qkv, 3, axis=-1)

    def split_heads(t):
        return t.reshape(b, p, n, heads, dim_head).transpose(0, 1, 3, 2, 4)

    q, k, v = map(split_heads, (q, k, v))
    dots = jnp.einsum("bphnd,bphmd->bphnm", q, k) * scale
    attn = jax.nn.softmax(dots, axis=-1)
    out = jnp.einsum("bphnm,bphmd->bphnd", attn, v)
    out = out.transpose(0, 1, 3, 2, 4).reshape(b, p, n, inner)
    return jnp.einsum("bpni,id->bpnd", out, w_out) + b_out


if __name__ == "__main__":
    # Small shapes consistent with MobileViT attention: x is (b, p, n, dim).
    b, p, n, dim = 2, 4, 8, 32
    heads, dim_head = 4, 8
    inner = heads * dim_head

    key = jax.random.PRNGKey(0)
    kx, kq, ko, kb = jax.random.split(key, 4)

    def bf16_exact(a):
        # Values exactly representable in bf16, so the in-kernel operand casts
        # are lossless and the f32 reference stays comparable.
        return a.astype(jnp.bfloat16).astype(jnp.float32)

    x = bf16_exact(jax.random.normal(kx, (b, p, n, dim), dtype=jnp.float32))
    # PyTorch Linear weight is (out, in); we keep the already-transposed (in, out)
    # form so the kernel computes x @ W.
    w_qkv = bf16_exact(jax.random.normal(kq, (dim, 3 * inner), jnp.float32) * 0.05)
    w_out = bf16_exact(jax.random.normal(ko, (inner, dim), jnp.float32) * 0.05)
    b_out = bf16_exact(jax.random.normal(kb, (dim,), jnp.float32) * 0.05)

    y = attention_pallas(x, w_qkv, w_out, b_out, heads=heads, dim_head=dim_head)
    y = jax.block_until_ready(y)

    y_ref = attention_ref(x, w_qkv, w_out, b_out, heads=heads, dim_head=dim_head)
    assert y.shape == (b, p, n, dim)
    # Tolerance covers bf16 MXU operands (f32 accumulation) vs the pure-f32
    # reference; real indexing/masking bugs show up at ~O(1) relative error.
    max_err = float(jnp.max(jnp.abs(y - y_ref)))
    assert jnp.allclose(y, y_ref, atol=3e-3, rtol=3e-2), \
        f"mismatch vs reference (max abs err {max_err})"

    print("KERNEL_OK")
</pallas_src>

<mosaic_0001>
module attributes {stable_mosaic.version = 11 : i64} {
  func.func @_attention_kernel(%arg0: i32, %arg1: memref<1x8x32xf32, #tpu.memory_space<vmem>>, %arg2: memref<32x96xbf16, #tpu.memory_space<vmem>>, %arg3: memref<32x32xbf16, #tpu.memory_space<vmem>>, %arg4: memref<1x32xf32, #tpu.memory_space<vmem>>, %arg5: memref<1x8x32xf32, #tpu.memory_space<vmem>>) attributes {dimension_semantics = [#tpu.dimension_semantics<parallel>], iteration_bounds = array<i64: 8>, scalar_prefetch = 0 : i64, scratch_operands = 0 : i64, tpu.core_type = #tpu.core_type<tc>, window_params = [{transform_indices = @transform_0, window_bounds = array<i64: 1, 8, 32>}, {pipeline_mode = #tpu.pipeline_mode<synchronous>, transform_indices = @transform_1, window_bounds = array<i64: 32, 96>}, {pipeline_mode = #tpu.pipeline_mode<synchronous>, transform_indices = @transform_2, window_bounds = array<i64: 32, 32>}, {pipeline_mode = #tpu.pipeline_mode<synchronous>, transform_indices = @transform_3, window_bounds = array<i64: 1, 32>}, {transform_indices = @transform_4, window_bounds = array<i64: 1, 8, 32>}]} {
    %c0 = arith.constant 0 : index
    %c0_0 = arith.constant 0 : index
    %c0_1 = arith.constant 0 : index
    %0 = vector.load %arg1[%c0, %c0_0, %c0_1] : memref<1x8x32xf32, #tpu.memory_space<vmem>>, vector<1x8x32xf32>
    %1 = vector.shape_cast %0 : vector<1x8x32xf32> to vector<8x32xf32>
    %2 = arith.truncf %1 : vector<8x32xf32> to vector<8x32xbf16>
    %c0_2 = arith.constant 0 : index
    %c0_3 = arith.constant 0 : index
    %3 = vector.load %arg2[%c0_2, %c0_3] : memref<32x96xbf16, #tpu.memory_space<vmem>>, vector<32x96xbf16>
    %c0_4 = arith.constant 0 : index
    %c0_5 = arith.constant 0 : index
    %4 = vector.load %arg3[%c0_4, %c0_5] : memref<32x32xbf16, #tpu.memory_space<vmem>>, vector<32x32xbf16>
    %cst = arith.constant dense<0.000000e+00> : vector<8x96xf32>
    %5 = tpu.matmul %2, %3, %cst {dimension_numbers = #tpu.dot_dimension_numbers<[1], [0], [0], [1], [0, 0, 1, 1], [], []>} : vector<8x32xbf16>, vector<32x96xbf16>, vector<8x96xf32> -> vector<8x96xf32>
    %cst_6 = arith.constant 0.000000e+00 : f32
    %6 = vector.broadcast %cst_6 : f32 to vector<8x32xf32>
    %7 = vector.extract_strided_slice %5 {offsets = [0, 0], sizes = [8, 8], strides = [1, 1]} : vector<8x96xf32> to vector<8x8xf32>
    %8 = vector.shape_cast %7 : vector<8x8xf32> to vector<1x8x8xf32>
    %9 = arith.truncf %8 : vector<1x8x8xf32> to vector<1x8x8xbf16>
    %10 = vector.extract_strided_slice %5 {offsets = [0, 32], sizes = [8, 8], strides = [1, 1]} : vector<8x96xf32> to vector<8x8xf32>
    %11 = vector.shape_cast %10 : vector<8x8xf32> to vector<1x8x8xf32>
    %12 = arith.truncf %11 : vector<1x8x8xf32> to vector<1x8x8xbf16>
    %13 = vector.extract_strided_slice %5 {offsets = [0, 64], sizes = [8, 8], strides = [1, 1]} : vector<8x96xf32> to vector<8x8xf32>
    %14 = vector.shape_cast %13 : vector<8x8xf32> to vector<1x8x8xf32>
    %15 = arith.truncf %14 : vector<1x8x8xf32> to vector<1x8x8xbf16>
    "tpu.trace_start"() <{level = 10 : i32, message = "bqd,bkd->bqk"}> : () -> ()
    %cst_7 = arith.constant dense<0.000000e+00> : vector<1x8x8xf32>
    %16 = tpu.matmul %9, %12, %cst_7 {dimension_numbers = #tpu.dot_dimension_numbers<[2], [2], [1], [1], [0, 0, 0, 1, 1, 1], [0], [0]>} : vector<1x8x8xbf16>, vector<1x8x8xbf16>, vector<1x8x8xf32> -> vector<1x8x8xf32>
    "tpu.trace_stop"() : () -> ()
    %cst_8 = arith.constant 0.353553385 : f32
    %17 = vector.broadcast %cst_8 : f32 to vector<1x8x8xf32>
    %18 = arith.mulf %16, %17 : vector<1x8x8xf32>
    %cst_9 = arith.constant dense<0xFF800000> : vector<1x8xf32>
    %19 = vector.multi_reduction <maximumf>, %18, %cst_9 [2] : vector<1x8x8xf32> to vector<1x8xf32>
    %20 = vector.shape_cast %19 : vector<1x8xf32> to vector<1x8x1xf32>
    %21 = vector.broadcast %20 : vector<1x8x1xf32> to vector<1x8x8xf32>
    %22 = arith.subf %18, %21 : vector<1x8x8xf32>
    %23 = math.exp %22 : vector<1x8x8xf32>
    %cst_10 = arith.constant dense<0.000000e+00> : vector<1x8xf32>
    %24 = vector.multi_reduction <add>, %23, %cst_10 [2] : vector<1x8x8xf32> to vector<1x8xf32>
    %25 = vector.shape_cast %24 : vector<1x8xf32> to vector<1x8x1xf32>
    %26 = tpu.reciprocal %25 : vector<1x8x1xf32> -> vector<1x8x1xf32>
    %27 = vector.broadcast %26 : vector<1x8x1xf32> to vector<1x8x8xf32>
    %28 = arith.mulf %23, %27 : vector<1x8x8xf32>
    %29 = arith.truncf %28 : vector<1x8x8xf32> to vector<1x8x8xbf16>
    "tpu.trace_start"() <{level = 10 : i32, message = "bqk,bkd->bqd"}> : () -> ()
    %cst_11 = arith.constant dense<0.000000e+00> : vector<1x8x8xf32>
    %30 = tpu.matmul %29, %15, %cst_11 {dimension_numbers = #tpu.dot_dimension_numbers<[2], [1], [1], [2], [0, 0, 0, 1, 1, 2], [0], [0]>} : vector<1x8x8xbf16>, vector<1x8x8xbf16>, vector<1x8x8xf32> -> vector<1x8x8xf32>
    "tpu.trace_stop"() : () -> ()
    %31 = vector.shape_cast %30 : vector<1x8x8xf32> to vector<8x8xf32>
    %32 = arith.truncf %31 : vector<8x8xf32> to vector<8x8xbf16>
    %33 = vector.extract_strided_slice %4 {offsets = [0, 0], sizes = [8, 32], strides = [1, 1]} : vector<32x32xbf16> to vector<8x32xbf16>
    %cst_12 = arith.constant dense<0.000000e+00> : vector<8x32xf32>
    %34 = tpu.matmul %32, %33, %cst_12 {dimension_numbers = #tpu.dot_dimension_numbers<[1], [0], [0], [1], [0, 0, 1, 1], [], []>} : vector<8x8xbf16>, vector<8x32xbf16>, vector<8x32xf32> -> vector<8x32xf32>
    %35 = arith.addf %6, %34 : vector<8x32xf32>
    %36 = vector.extract_strided_slice %5 {offsets = [0, 8], sizes = [8, 8], strides = [1, 1]} : vector<8x96xf32> to vector<8x8xf32>
    %37 = vector.shape_cast %36 : vector<8x8xf32> to vector<1x8x8xf32>
    %38 = arith.truncf %37 : vector<1x8x8xf32> to vector<1x8x8xbf16>
    %39 = vector.extract_strided_slice %5 {offsets = [0, 40], sizes = [8, 8], strides = [1, 1]} : vector<8x96xf32> to vector<8x8xf32>
    %40 = vector.shape_cast %39 : vector<8x8xf32> to vector<1x8x8xf32>
    %41 = arith.truncf %40 : vector<1x8x8xf32> to vector<1x8x8xbf16>
    %42 = vector.extract_strided_slice %5 {offsets = [0, 72], sizes = [8, 8], strides = [1, 1]} : vector<8x96xf32> to vector<8x8xf32>
    %43 = vector.shape_cast %42 : vector<8x8xf32> to vector<1x8x8xf32>
    %44 = arith.truncf %43 : vector<1x8x8xf32> to vector<1x8x8xbf16>
    "tpu.trace_start"() <{level = 10 : i32, message = "bqd,bkd->bqk"}> : () -> ()
    %cst_13 = arith.constant dense<0.000000e+00> : vector<1x8x8xf32>
    %45 = tpu.matmul %38, %41, %cst_13 {dimension_numbers = #tpu.dot_dimension_numbers<[2], [2], [1], [1], [0, 0, 0, 1, 1, 1], [0], [0]>} : vector<1x8x8xbf16>, vector<1x8x8xbf16>, vector<1x8x8xf32> -> vector<1x8x8xf32>
    "tpu.trace_stop"() : () -> ()
    %cst_14 = arith.constant 0.353553385 : f32
    %46 = vector.broadcast %cst_14 : f32 to vector<1x8x8xf32>
    %47 = arith.mulf %45, %46 : vector<1x8x8xf32>
    %cst_15 = arith.constant dense<0xFF800000> : vector<1x8xf32>
    %48 = vector.multi_reduction <maximumf>, %47, %cst_15 [2] : vector<1x8x8xf32> to vector<1x8xf32>
    %49 = vector.shape_cast %48 : vector<1x8xf32> to vector<1x8x1xf32>
    %50 = vector.broadcast %49 : vector<1x8x1xf32> to vector<1x8x8xf32>
    %51 = arith.subf %47, %50 : vector<1x8x8xf32>
    %52 = math.exp %51 : vector<1x8x8xf32>
    %cst_16 = arith.constant dense<0.000000e+00> : vector<1x8xf32>
    %53 = vector.multi_reduction <add>, %52, %cst_16 [2] : vector<1x8x8xf32> to vector<1x8xf32>
    %54 = vector.shape_cast %53 : vector<1x8xf32> to vector<1x8x1xf32>
    %55 = tpu.reciprocal %54 : vector<1x8x1xf32> -> vector<1x8x1xf32>
    %56 = vector.broadcast %55 : vector<1x8x1xf32> to vector<1x8x8xf32>
    %57 = arith.mulf %52, %56 : vector<1x8x8xf32>
    %58 = arith.truncf %57 : vector<1x8x8xf32> to vector<1x8x8xbf16>
    "tpu.trace_start"() <{level = 10 : i32, message = "bqk,bkd->bqd"}> : () -> ()
    %cst_17 = arith.constant dense<0.000000e+00> : vector<1x8x8xf32>
    %59 = tpu.matmul %58, %44, %cst_17 {dimension_numbers = #tpu.dot_dimension_numbers<[2], [1], [1], [2], [0, 0, 0, 1, 1, 2], [0], [0]>} : vector<1x8x8xbf16>, vector<1x8x8xbf16>, vector<1x8x8xf32> -> vector<1x8x8xf32>
    "tpu.trace_stop"() : () -> ()
    %60 = vector.shape_cast %59 : vector<1x8x8xf32> to vector<8x8xf32>
    %61 = arith.truncf %60 : vector<8x8xf32> to vector<8x8xbf16>
    %62 = vector.extract_strided_slice %4 {offsets = [8, 0], sizes = [8, 32], strides = [1, 1]} : vector<32x32xbf16> to vector<8x32xbf16>
    %cst_18 = arith.constant dense<0.000000e+00> : vector<8x32xf32>
    %63 = tpu.matmul %61, %62, %cst_18 {dimension_numbers = #tpu.dot_dimension_numbers<[1], [0], [0], [1], [0, 0, 1, 1], [], []>} : vector<8x8xbf16>, vector<8x32xbf16>, vector<8x32xf32> -> vector<8x32xf32>
    %64 = arith.addf %35, %63 : vector<8x32xf32>
    %65 = vector.extract_strided_slice %5 {offsets = [0, 16], sizes = [8, 8], strides = [1, 1]} : vector<8x96xf32> to vector<8x8xf32>
    %66 = vector.shape_cast %65 : vector<8x8xf32> to vector<1x8x8xf32>
    %67 = arith.truncf %66 : vector<1x8x8xf32> to vector<1x8x8xbf16>
    %68 = vector.extract_strided_slice %5 {offsets = [0, 48], sizes = [8, 8], strides = [1, 1]} : vector<8x96xf32> to vector<8x8xf32>
    %69 = vector.shape_cast %68 : vector<8x8xf32> to vector<1x8x8xf32>
    %70 = arith.truncf %69 : vector<1x8x8xf32> to vector<1x8x8xbf16>
    %71 = vector.extract_strided_slice %5 {offsets = [0, 80], sizes = [8, 8], strides = [1, 1]} : vector<8x96xf32> to vector<8x8xf32>
    %72 = vector.shape_cast %71 : vector<8x8xf32> to vector<1x8x8xf32>
    %73 = arith.truncf %72 : vector<1x8x8xf32> to vector<1x8x8xbf16>
    "tpu.trace_start"() <{level = 10 : i32, message = "bqd,bkd->bqk"}> : () -> ()
    %cst_19 = arith.constant dense<0.000000e+00> : vector<1x8x8xf32>
    %74 = tpu.matmul %67, %70, %cst_19 {dimension_numbers = #tpu.dot_dimension_numbers<[2], [2], [1], [1], [0, 0, 0, 1, 1, 1], [0], [0]>} : vector<1x8x8xbf16>, vector<1x8x8xbf16>, vector<1x8x8xf32> -> vector<1x8x8xf32>
    "tpu.trace_stop"() : () -> ()
    %cst_20 = arith.constant 0.353553385 : f32
    %75 = vector.broadcast %cst_20 : f32 to vector<1x8x8xf32>
    %76 = arith.mulf %74, %75 : vector<1x8x8xf32>
    %cst_21 = arith.constant dense<0xFF800000> : vector<1x8xf32>
    %77 = vector.multi_reduction <maximumf>, %76, %cst_21 [2] : vector<1x8x8xf32> to vector<1x8xf32>
    %78 = vector.shape_cast %77 : vector<1x8xf32> to vector<1x8x1xf32>
    %79 = vector.broadcast %78 : vector<1x8x1xf32> to vector<1x8x8xf32>
    %80 = arith.subf %76, %79 : vector<1x8x8xf32>
    %81 = math.exp %80 : vector<1x8x8xf32>
    %cst_22 = arith.constant dense<0.000000e+00> : vector<1x8xf32>
    %82 = vector.multi_reduction <add>, %81, %cst_22 [2] : vector<1x8x8xf32> to vector<1x8xf32>
    %83 = vector.shape_cast %82 : vector<1x8xf32> to vector<1x8x1xf32>
    %84 = tpu.reciprocal %83 : vector<1x8x1xf32> -> vector<1x8x1xf32>
    %85 = vector.broadcast %84 : vector<1x8x1xf32> to vector<1x8x8xf32>
    %86 = arith.mulf %81, %85 : vector<1x8x8xf32>
    %87 = arith.truncf %86 : vector<1x8x8xf32> to vector<1x8x8xbf16>
    "tpu.trace_start"() <{level = 10 : i32, message = "bqk,bkd->bqd"}> : () -> ()
    %cst_23 = arith.constant dense<0.000000e+00> : vector<1x8x8xf32>
    %88 = tpu.matmul %87, %73, %cst_23 {dimension_numbers = #tpu.dot_dimension_numbers<[2], [1], [1], [2], [0, 0, 0, 1, 1, 2], [0], [0]>} : vector<1x8x8xbf16>, vector<1x8x8xbf16>, vector<1x8x8xf32> -> vector<1x8x8xf32>
    "tpu.trace_stop"() : () -> ()
    %89 = vector.shape_cast %88 : vector<1x8x8xf32> to vector<8x8xf32>
    %90 = arith.truncf %89 : vector<8x8xf32> to vector<8x8xbf16>
    %91 = vector.extract_strided_slice %4 {offsets = [16, 0], sizes = [8, 32], strides = [1, 1]} : vector<32x32xbf16> to vector<8x32xbf16>
    %cst_24 = arith.constant dense<0.000000e+00> : vector<8x32xf32>
    %92 = tpu.matmul %90, %91, %cst_24 {dimension_numbers = #tpu.dot_dimension_numbers<[1], [0], [0], [1], [0, 0, 1, 1], [], []>} : vector<8x8xbf16>, vector<8x32xbf16>, vector<8x32xf32> -> vector<8x32xf32>
    %93 = arith.addf %64, %92 : vector<8x32xf32>
    %94 = vector.extract_strided_slice %5 {offsets = [0, 24], sizes = [8, 8], strides = [1, 1]} : vector<8x96xf32> to vector<8x8xf32>
    %95 = vector.shape_cast %94 : vector<8x8xf32> to vector<1x8x8xf32>
    %96 = arith.truncf %95 : vector<1x8x8xf32> to vector<1x8x8xbf16>
    %97 = vector.extract_strided_slice %5 {offsets = [0, 56], sizes = [8, 8], strides = [1, 1]} : vector<8x96xf32> to vector<8x8xf32>
    %98 = vector.shape_cast %97 : vector<8x8xf32> to vector<1x8x8xf32>
    %99 = arith.truncf %98 : vector<1x8x8xf32> to vector<1x8x8xbf16>
    %100 = vector.extract_strided_slice %5 {offsets = [0, 88], sizes = [8, 8], strides = [1, 1]} : vector<8x96xf32> to vector<8x8xf32>
    %101 = vector.shape_cast %100 : vector<8x8xf32> to vector<1x8x8xf32>
    %102 = arith.truncf %101 : vector<1x8x8xf32> to vector<1x8x8xbf16>
    "tpu.trace_start"() <{level = 10 : i32, message = "bqd,bkd->bqk"}> : () -> ()
    %cst_25 = arith.constant dense<0.000000e+00> : vector<1x8x8xf32>
    %103 = tpu.matmul %96, %99, %cst_25 {dimension_numbers = #tpu.dot_dimension_numbers<[2], [2], [1], [1], [0, 0, 0, 1, 1, 1], [0], [0]>} : vector<1x8x8xbf16>, vector<1x8x8xbf16>, vector<1x8x8xf32> -> vector<1x8x8xf32>
    "tpu.trace_stop"() : () -> ()
    %cst_26 = arith.constant 0.353553385 : f32
    %104 = vector.broadcast %cst_26 : f32 to vector<1x8x8xf32>
    %105 = arith.mulf %103, %104 : vector<1x8x8xf32>
    %cst_27 = arith.constant dense<0xFF800000> : vector<1x8xf32>
    %106 = vector.multi_reduction <maximumf>, %105, %cst_27 [2] : vector<1x8x8xf32> to vector<1x8xf32>
    %107 = vector.shape_cast %106 : vector<1x8xf32> to vector<1x8x1xf32>
    %108 = vector.broadcast %107 : vector<1x8x1xf32> to vector<1x8x8xf32>
    %109 = arith.subf %105, %108 : vector<1x8x8xf32>
    %110 = math.exp %109 : vector<1x8x8xf32>
    %cst_28 = arith.constant dense<0.000000e+00> : vector<1x8xf32>
    %111 = vector.multi_reduction <add>, %110, %cst_28 [2] : vector<1x8x8xf32> to vector<1x8xf32>
    %112 = vector.shape_cast %111 : vector<1x8xf32> to vector<1x8x1xf32>
    %113 = tpu.reciprocal %112 : vector<1x8x1xf32> -> vector<1x8x1xf32>
    %114 = vector.broadcast %113 : vector<1x8x1xf32> to vector<1x8x8xf32>
    %115 = arith.mulf %110, %114 : vector<1x8x8xf32>
    %116 = arith.truncf %115 : vector<1x8x8xf32> to vector<1x8x8xbf16>
    "tpu.trace_start"() <{level = 10 : i32, message = "bqk,bkd->bqd"}> : () -> ()
    %cst_29 = arith.constant dense<0.000000e+00> : vector<1x8x8xf32>
    %117 = tpu.matmul %116, %102, %cst_29 {dimension_numbers = #tpu.dot_dimension_numbers<[2], [1], [1], [2], [0, 0, 0, 1, 1, 2], [0], [0]>} : vector<1x8x8xbf16>, vector<1x8x8xbf16>, vector<1x8x8xf32> -> vector<1x8x8xf32>
    "tpu.trace_stop"() : () -> ()
    %118 = vector.shape_cast %117 : vector<1x8x8xf32> to vector<8x8xf32>
    %119 = arith.truncf %118 : vector<8x8xf32> to vector<8x8xbf16>
    %120 = vector.extract_strided_slice %4 {offsets = [24, 0], sizes = [8, 32], strides = [1, 1]} : vector<32x32xbf16> to vector<8x32xbf16>
    %cst_30 = arith.constant dense<0.000000e+00> : vector<8x32xf32>
    %121 = tpu.matmul %119, %120, %cst_30 {dimension_numbers = #tpu.dot_dimension_numbers<[1], [0], [0], [1], [0, 0, 1, 1], [], []>} : vector<8x8xbf16>, vector<8x32xbf16>, vector<8x32xf32> -> vector<8x32xf32>
    %122 = arith.addf %93, %121 : vector<8x32xf32>
    %c0_31 = arith.constant 0 : index
    %c0_32 = arith.constant 0 : index
    %123 = vector.load %arg4[%c0_31, %c0_32] : memref<1x32xf32, #tpu.memory_space<vmem>>, vector<1x32xf32>
    %124 = vector.broadcast %123 : vector<1x32xf32> to vector<8x32xf32>
    %125 = arith.addf %122, %124 : vector<8x32xf32>
    %126 = vector.shape_cast %125 : vector<8x32xf32> to vector<1x8x32xf32>
    %c0_33 = arith.constant 0 : index
    %c0_34 = arith.constant 0 : index
    %c0_35 = arith.constant 0 : index
    %127 = vector.load %arg5[%c0_33, %c0_34, %c0_35] : memref<1x8x32xf32, #tpu.memory_space<vmem>>, vector<1x8x32xf32>
    tpu.vector_store %arg5[%c0_33, %c0_34, %c0_35], %126 {strides = array<i32>} : memref<1x8x32xf32, #tpu.memory_space<vmem>>, vector<1x8x32xf32>,
    return
  }
  func.func @transform_0(%arg0: i32) -> (i32, i32, i32) {
    %c0_i32 = arith.constant 0 : i32
    %c0_i32_0 = arith.constant 0 : i32
    %c0_i32_1 = arith.constant 0 : i32
    return %arg0, %c0_i32, %c0_i32_0 : i32, i32, i32
  }
  func.func @transform_1(%arg0: i32) -> (i32, i32) {
    %c0_i32 = arith.constant 0 : i32
    %c0_i32_0 = arith.constant 0 : i32
    %c0_i32_1 = arith.constant 0 : i32
    return %c0_i32, %c0_i32_0 : i32, i32
  }
  func.func @transform_2(%arg0: i32) -> (i32, i32) {
    %c0_i32 = arith.constant 0 : i32
    %c0_i32_0 = arith.constant 0 : i32
    %c0_i32_1 = arith.constant 0 : i32
    return %c0_i32, %c0_i32_0 : i32, i32
  }
  func.func @transform_3(%arg0: i32) -> (i32, i32) {
    %c0_i32 = arith.constant 0 : i32
    %c0_i32_0 = arith.constant 0 : i32
    %c0_i32_1 = arith.constant 0 : i32
    return %c0_i32, %c0_i32_0 : i32, i32
  }
  func.func @transform_4(%arg0: i32) -> (i32, i32, i32) {
    %c0_i32 = arith.constant 0 : i32
    %c0_i32_0 = arith.constant 0 : i32
    %c0_i32_1 = arith.constant 0 : i32
    return %arg0, %c0_i32, %c0_i32_0 : i32, i32, i32
  }
}

</mosaic_0001>

<llo_original>
// kernel: tpu_custom_call.1
$region0: #{tpu_custom_call.1}
  #allocation0 [shape = 'u32[]', space=smem, size = 0x4, offset = 0x4, fixed_abs, tag = 'smem constant byte address 0x4 - core index']
  #allocation1 [shape = 'u32[72,128]{1,0:T(1,128)}', space=vmem, size = 0x9000, scoped, tag = 'internal scratch']
  %s0 = inlined_call_operand.hbm [shape: f32[8,8,32], index: 0, kind: input, shape index: {}]
  %s1 = inlined_call_operand.hbm [shape: bf16[32,96], index: 1, kind: input, shape index: {}]
  %s2 = inlined_call_operand.hbm [shape: bf16[32,32], index: 2, kind: input, shape index: {}]
  %s3 = inlined_call_operand.vmem [shape: f32[1,32], index: 3, kind: input, shape index: {}]
  %s4 = inlined_call_operand.hbm [shape: f32[8,8,32], index: 4, kind: output, shape index: {}]
  %s5 = sld [smem:[#allocation0]]
  $region61: #{tpu_custom_call.1} parent=0
    _
  %s7 = ssub.s32 1, %s5
  %s8 = scalar_select 0, %s7, %s5
  $region1: #{tpu_custom_call.1} parent=0
    #allocation2 [shape = 'u8[8192]{0}', space=vmem, size = 0x2000, scoped, tag = 'input window, operand 0']
    #allocation3 [shape = 's32[2]{0}', space=sflag, size = 0x8, scoped, tag = 'scoped memory for tpu_custom_call.1']
    #allocation4 [shape = 's32[2]{0}', space=sflag, size = 0x8, scoped, tag = 'scoped memory for tpu_custom_call.1']
    #allocation5 [shape = 'u8[8192]{0}', space=vmem, size = 0x2000, scoped, tag = 'input window, operand 1, single buffered']
    #allocation6 [shape = 's32[1]{0}', space=sflag, size = 0x4, scoped, tag = 'scoped memory for tpu_custom_call.1']
    #allocation7 [shape = 'u8[8192]{0}', space=vmem, size = 0x2000, scoped, tag = 'input window, operand 2, single buffered']
    #allocation8 [shape = 'u8[8192]{0}', space=vmem, size = 0x2000, scoped, tag = 'output window, operand 0']
    %9 = vsyncpa [#allocation3], 0
    %s10 = scalar_lea.sflag [#allocation3], 1
    %11 = vsyncpa %s10, 0
    %12 = vsyncpa [#allocation6], 0
    %13 = vsyncpa [#allocation4], 0
    %s14 = scalar_lea.sflag [#allocation4], 1
    %15 = vsyncpa %s14, 0
    loop: start=0, step=1, limit=10
    $region2: #{tpu_custom_call.1} parent=1 // loop_pre_header
      _
    $region3: #{tpu_custom_call.1} parent=1 // loop_header
      %s17 = sphi 0, %s21
      %p18 = scmp.ge.s32.totalorder %s17, 10
      %s27 = sphi 0, %s29
      %s30 = sphi 0, %s27
      %s31 = sphi 0, %s30
      %s47 = sphi 0, %s31
      %s51 = sphi 0, %s51
      %s53 = sphi 0, %s51
      %s54 = sphi 0, %s53
      %s68 = sphi 0, %s54
      %s72 = sphi 0, %s72
      %s74 = sphi 0, %s72
      %s75 = sphi 0, %s74
      %s89 = sphi 0, %s75
      %s93 = sphi 0, %s93
      %s95 = sphi 0, %s93
      %s96 = sphi 0, %s95
      %s110 = sphi 0, %s96
      %s116 = sphi 0, %s118
      %s119 = sphi 0, %s116
      %s120 = sphi 0, %s119
      %s136 = sphi 0, %s120
    $region4: #{tpu_custom_call.1} parent=1 // loop_header_branch
      %20 = sbr.rel (%p18) target = $region8
    $region5: #{tpu_custom_call.1} parent=1 // loop_body
      %s22 = ssub.s32 %s17, 1
      %s23 = ssub.s32 %s17, 2
      %s24 = sadd.s32 %s17, 1
      %s25 = ssub.s32 %s17, %s24
      %p26 = scmp.eq.s32.totalorder %s25, 0
      %s28 = sadd.s32 %s27, 1
      %s29 = scalar_select %p26, %s27, %s28
      %p32 = pneg %p26
      %p33 = scmp.eq.s32.totalorder %s17, 7
      %p34 = por %p32, %p33
      %p35 = scmp.ne.s32.totalorder %s27, %s30
      %p36 = scmp.eq.s32.totalorder %s17, 0
      %p37 = por %p35, %p36
      %p38 = scmp.ne.s32.totalorder %s27, %s30
      %p39 = scmp.eq.s32.totalorder %s22, 7
      %p40 = por %p38, %p39
      %p41 = scmp.ne.s32.totalorder %s30, %s31
      %p42 = scmp.eq.s32.totalorder %s22, 0
      %p43 = por %p41, %p42
      %p44 = scmp.ne.s32.totalorder %s30, %s31
      %p45 = scmp.eq.s32.totalorder %s23, 7
      %p46 = por %p44, %p45
      %p48 = scmp.ne.s32.totalorder %s31, %s47
      %p49 = scmp.eq.s32.totalorder %s23, 0
      %p50 = por %p48, %p49
      %s52 = sadd.s32 %s51, 1
      %p55 = scmp.eq.s32.totalorder %s17, 7
      %p56 = scmp.ne.s32.totalorder %s51, %s53
      %p57 = scmp.eq.s32.totalorder %s17, 0
      %p58 = por %p56, %p57
      %p59 = scmp.ne.s32.totalorder %s51, %s53
      %p60 = scmp.eq.s32.totalorder %s22, 7
      %p61 = por %p59, %p60
      %p62 = scmp.ne.s32.totalorder %s53, %s54
      %p63 = scmp.eq.s32.totalorder %s22, 0
      %p64 = por %p62, %p63
      %p65 = scmp.ne.s32.totalorder %s53, %s54
      %p66 = scmp.eq.s32.totalorder %s23, 7
      %p67 = por %p65, %p66
      %p69 = scmp.ne.s32.totalorder %s54, %s68
      %p70 = scmp.eq.s32.totalorder %s23, 0
      %p71 = por %p69, %p70
      %s73 = sadd.s32 %s72, 1
      %p76 = scmp.eq.s32.totalorder %s17, 7
      %p77 = scmp.ne.s32.totalorder %s72, %s74
      %p78 = scmp.eq.s32.totalorder %s17, 0
      %p79 = por %p77, %p78
      %p80 = scmp.ne.s32.totalorder %s72, %s74
      %p81 = scmp.eq.s32.totalorder %s22, 7
      %p82 = por %p80, %p81
      %p83 = scmp.ne.s32.totalorder %s74, %s75
      %p84 = scmp.eq.s32.totalorder %s22, 0
      %p85 = por %p83, %p84
      %p86 = scmp.ne.s32.totalorder %s74, %s75
      %p87 = scmp.eq.s32.totalorder %s23, 7
      %p88 = por %p86, %p87
      %p90 = scmp.ne.s32.totalorder %s75, %s89
      %p91 = scmp.eq.s32.totalorder %s23, 0
      %p92 = por %p90, %p91
      %s94 = sadd.s32 %s93, 1
      %p97 = scmp.eq.s32.totalorder %s17, 7
      %p98 = scmp.ne.s32.totalorder %s93, %s95
      %p99 = scmp.eq.s32.totalorder %s17, 0
      %p100 = por %p98, %p99
      %p101 = scmp.ne.s32.totalorder %s93, %s95
      %p102 = scmp.eq.s32.totalorder %s22, 7
      %p103 = por %p101, %p102
      %p104 = scmp.ne.s32.totalorder %s95, %s96
      %p105 = scmp.eq.s32.totalorder %s22, 0
      %p106 = por %p104, %p105
      %p107 = scmp.ne.s32.totalorder %s95, %s96
      %p108 = scmp.eq.s32.totalorder %s23, 7
      %p109 = por %p107, %p108
      %p111 = scmp.ne.s32.totalorder %s96, %s110
      %p112 = scmp.eq.s32.totalorder %s23, 0
      %p113 = por %p111, %p112
      %s114 = ssub.s32 %s17, %s24
      %p115 = scmp.eq.s32.totalorder %s114, 0
      %s117 = sadd.s32 %s116, 1
      %s118 = scalar_select %p115, %s116, %s117
      %p121 = pneg %p115
      %p122 = scmp.eq.s32.totalorder %s17, 7
      %p123 = por %p121, %p122
      %p124 = scmp.ne.s32.totalorder %s116, %s119
      %p125 = scmp.eq.s32.totalorder %s17, 0
      %p126 = por %p124, %p125
      %p127 = scmp.ne.s32.totalorder %s116, %s119
      %p128 = scmp.eq.s32.totalorder %s22, 7
      %p129 = por %p127, %p128
      %p130 = scmp.ne.s32.totalorder %s119, %s120
      %p131 = scmp.eq.s32.totalorder %s22, 0
      %p132 = por %p130, %p131
      %p133 = scmp.ne.s32.totalorder %s119, %s120
      %p134 = scmp.eq.s32.totalorder %s23, 7
      %p135 = por %p133, %p134
      %p137 = scmp.ne.s32.totalorder %s120, %s136
      %p138 = scmp.eq.s32.totalorder %s23, 0
      %p139 = por %p137, %p138
      %p140 = scmp.le.s32.totalorder 1, %s17
      %p141 = scmp.lt.s32.totalorder %s17, 9
      %p142 = pnand %p140, %p141
      %p143 = pneg %p142
      // Predicated region
      $region9: #{tpu_custom_call.1} parent=5 // pred_check
        _
      $region10: #{tpu_custom_call.1} parent=5 // pred_check_branch
        %145 = sbr.rel (%p142) target = $region12
      $region11: #{tpu_custom_call.1} parent=5 // pred_region
        %s146 = ssub.s32 %s17, 1
        // Predicated region
        $region13: #{tpu_custom_call.1} parent=11 // pred_check
          %p147 = pneg %p64
        $region14: #{tpu_custom_call.1} parent=11 // pred_check_branch
          %149 = sbr.rel (%p147) target = $region16
        $region15: #{tpu_custom_call.1} parent=11 // pred_region
          %151 = vsyncadd [#allocation6], 0
          %s152 = sshll.u32 %s1, 4
          %s153 = int_to_ptr.hbm [resolvable:$true] %s152
          %s154 = sshll.u32 [#allocation5], 4
          %s155 = int_to_ptr.vmem [resolvable:$true] %s154
          %160 = dma.hbm_to_vmem [thread:$0]  %s153, 256, %s155, [#allocation6], 64, 64, 4
        $region16: #{tpu_custom_call.1} parent=11 // pred_fallthru
          _
        // Predicated region
        $region17: #{tpu_custom_call.1} parent=11 // pred_check
          %p161 = pneg %p85
        $region18: #{tpu_custom_call.1} parent=11 // pred_check_branch
          %163 = sbr.rel (%p161) target = $region20
        $region19: #{tpu_custom_call.1} parent=11 // pred_region
          %165 = vsyncadd [#allocation6], 0
          %s166 = sshll.u32 %s2, 4
          %s167 = int_to_ptr.hbm [resolvable:$true] %s166
          %s168 = sshll.u32 [#allocation7], 4
          %s169 = int_to_ptr.vmem [resolvable:$true] %s168
          %174 = dma.hbm_to_vmem [thread:$0]  %s167, 256, %s169, [#allocation6], 64, 64, 4
        $region20: #{tpu_custom_call.1} parent=11 // pred_fallthru
          _
        // Predicated region
        $region21: #{tpu_custom_call.1} parent=11 // pred_check
          %p175 = pneg %p106
        $region22: #{tpu_custom_call.1} parent=11 // pred_check_branch
          %177 = sbr.rel (%p175) target = $region24
        $region23: #{tpu_custom_call.1} parent=11 // pred_region
          _
        $region24: #{tpu_custom_call.1} parent=11 // pred_fallthru
          _
      $region12: #{tpu_custom_call.1} parent=5 // pred_fallthru
        _
      %p178 = scmp.lt.s32.totalorder %s17, 8
      // Predicated region
      $region25: #{tpu_custom_call.1} parent=5 // pred_check
        %p179 = pneg %p178
      $region26: #{tpu_custom_call.1} parent=5 // pred_check_branch
        %181 = sbr.rel (%p179) target = $region28
      $region27: #{tpu_custom_call.1} parent=5 // pred_region
        // Predicated region
        $region29: #{tpu_custom_call.1} parent=27 // pred_check
          %p182 = pneg %p37
        $region30: #{tpu_custom_call.1} parent=27 // pred_check_branch
          %184 = sbr.rel (%p182) target = $region32
        $region31: #{tpu_custom_call.1} parent=27 // pred_region
          %s185 = sand.u32 %s27, 1
          %s186 = scalar_lea.sflag [#allocation3], %s185
          %s187 = sand.u32 %s27, 1
          %s188 = smul.addr %s187, 8
          %s189 = scalar_lea.vmem [#allocation2], %s188
          %191 = vsyncadd %s186, 0
          %s192 = smul.addr %s17, 8
          %s193 = scalar_lea.hbm %s0, %s192
          %s195 = sshll.u32 %s193, 4
          %s196 = int_to_ptr.hbm [resolvable:$true] %s195
          %s197 = sshll.u32 %s189, 4
          %s198 = int_to_ptr.vmem [resolvable:$true] %s197
          %200 = dma.hbm_to_vmem [thread:$0]  %s196, 128, %s198, %s186
        $region32: #{tpu_custom_call.1} parent=27 // pred_fallthru
          _
      $region28: #{tpu_custom_call.1} parent=5 // pred_fallthru
        _
      %p201 = scmp.le.s32.totalorder 1, %s17
      %p202 = scmp.lt.s32.totalorder %s17, 9
      %p203 = pnand %p201, %p202
      %p204 = pneg %p203
      // Predicated region
      $region33: #{tpu_custom_call.1} parent=5 // pred_check
        _
      $region34: #{tpu_custom_call.1} parent=5 // pred_check_branch
        %206 = sbr.rel (%p203) target = $region36
      $region35: #{tpu_custom_call.1} parent=5 // pred_region
        %s207 = ssub.s32 %s17, 1
        %s208 = sand.u32 %s30, 1
        %s209 = scalar_lea.sflag [#allocation3], %s208
        %s210 = sand.u32 %s30, 1
        %s211 = smul.addr %s210, 8
        %s212 = scalar_lea.vmem [#allocation2], %s211
        // Predicated region
        $region37: #{tpu_custom_call.1} parent=35 // pred_check
          %p213 = pneg %p43
        $region38: #{tpu_custom_call.1} parent=35 // pred_check_branch
          %215 = sbr.rel (%p213) target = $region40
        $region39: #{tpu_custom_call.1} parent=35 // pred_region
          %217 = dma.done %s209, 128
        $region40: #{tpu_custom_call.1} parent=35 // pred_fallthru
          _
        // Predicated region
        $region41: #{tpu_custom_call.1} parent=35 // pred_check
          %p218 = pneg %p64
        $region42: #{tpu_custom_call.1} parent=35 // pred_check_branch
          %220 = sbr.rel (%p218) target = $region44
        $region43: #{tpu_custom_call.1} parent=35 // pred_region
          %222 = dma.done [#allocation6], 256
        $region44: #{tpu_custom_call.1} parent=35 // pred_fallthru
          _
        // Predicated region
        $region45: #{tpu_custom_call.1} parent=35 // pred_check
          %p223 = pneg %p85
        $region46: #{tpu_custom_call.1} parent=35 // pred_check_branch
          %225 = sbr.rel (%p223) target = $region48
        $region47: #{tpu_custom_call.1} parent=35 // pred_region
          %227 = dma.done [#allocation6], 256
        $region48: #{tpu_custom_call.1} parent=35 // pred_fallthru
          _
        %s228 = sand.u32 %s30, 1
        %s229 = scalar_lea.sflag [#allocation3], %s228
        %s230 = sand.u32 %s30, 1
        %s231 = smul.addr %s230, 8
        %s232 = scalar_lea.vmem [#allocation2], %s231
        %p233 = pneg %p43
        %p234 = pneg %p40
        %p235 = pneg %p64
        %p236 = pneg %p61
        %p237 = pneg %p85
        %p238 = pneg %p82
        %p239 = pneg %p106
        %p240 = pneg %p103
        %p241 = pneg %p132
        %p242 = pneg %p129
        %s243 = sand.u32 %s119, 1
        %s244 = scalar_lea.sflag [#allocation4], %s243
        %s245 = sand.u32 %s119, 1
        %s246 = smul.addr %s245, 8
        %s247 = scalar_lea.vmem [#allocation8], %s246
        %v249 = vld [vmem:[%s212] sm:$0xff]
        %v250 = vpack.c.bf16 %v249, %v249
        %v251 = vld [vmem:[#allocation5] sm:$0xf]
        %v252 = vld [vmem:[#allocation5 + $0x4] sm:$0xf]
        %v253 = vld [vmem:[#allocation5 + $0x8] sm:$0xf]
        %v254 = vld [vmem:[#allocation5 + $0xc] sm:$0xf]
        %v255 = vld [vmem:[#allocation7] sm:$0xf]
        %v256 = vld [vmem:[#allocation7 + $0x4] sm:$0xf]
        %v257 = vld [vmem:[#allocation7 + $0x8] sm:$0xf]
        %v258 = vld [vmem:[#allocation7 + $0xc] sm:$0xf]
        %v263 = vunpack.c.l.b16 %v251
        %v264 = vunpack.c.l.b16 %v252
        %v265 = vunpack.c.l.b16 %v253
        %v266 = vunpack.c.l.b16 %v254
        %v267 = vpack.c.b16 %v264, %v263
        %v268 = vpack.c.b16 %v266, %v265
        %vm271 = vcmask 261120
        %v273 = vsel %vm271, %v250, 0
        %275 = vmatpush.bf16.msra.mxu0 0
        %276 = vmatpush.bf16.msra.mxu0 0
        %277 = vmatpush.bf16.msra.mxu0 0
        %278 = vmatpush.bf16.msra.mxu0 0
        %279 = vmatpush.bf16.msra.mxu0 0
        %280 = vmatpush.bf16.msra.mxu0 0
        %281 = vmatpush.bf16.msra.mxu0 %v268
        %282 = vmatpush.bf16.msra.mxu0 %v267
        %283 = vmatmul.bf16.gmra.mxu0 %v273
        %v284 = vpop.f32.mrf.mxu0
        %v285 = vadd.f32 0.0, %v284
        %v286 = vpop.f32.mrf.mxu0
        %287 = vdwg.mxu0
        %v288 = vpack.c.bf16 %v285, %v285
        %v290 = vunpack.c.l.b16 %v288
        %v291 = vpack.c.b16 %v290, %v290
        %292 = vrot.lane.b32.xlu0 %v291, 96
        %v293 = vpop.permute.xlu0 %292
        %vm294 = vcmask 64512
        %v296 = vsel %vm294, %v288, 0
        %v299 = vsel %vm294, %v293, 0
        %301 = vmatpush.bf16.xpose.msra.mxu0 0
        %302 = vmatpush.bf16.xpose.msra.mxu0 0
        %303 = vmatpush.bf16.xpose.msra.mxu0 0
        %304 = vmatpush.bf16.xpose.msra.mxu0 0
        %305 = vmatpush.bf16.xpose.msra.mxu0 0
        %306 = vmatpush.bf16.xpose.msra.mxu0 0
        %307 = vmatpush.bf16.xpose.msra.mxu0 0
        %308 = vmatpush.bf16.xpose.msra.mxu0 %v299
        %309 = vmatmul.bf16.gmra.mxu0 %v296
        %v310 = vpop.f32.mrf.mxu0
        %v311 = vadd.f32 0.0, %v310
        %v312 = vpop.f32.mrf.mxu0
        %313 = vdwg.mxu0
        %v314 = vmul.f32 %v311, 0.35355338
        %v315 = vsel %vm294, %v314, -inf
        %316 = vmax.xlane.f32.xlu0 %v315
        %v317 = vpop.xlane.xlu0 %316
        %v318 = vsub.f32 %v314, %v317
        %v319 = vmul.f32 %v318, 1.442695
        %v320 = vpow.pop %v319
        %v321 = vsel %vm294, %v320, 0.0
        %322 = vadd.xlane.f32.xlu0 %v321
        %v323 = vpop.xlane.xlu0 %322
        %v324 = vrcp.pop %v323
        %v325 = vmul.f32 %v323, %v324
        %v326 = vsub.f32 1.0, %v325
        %v327 = vmul.f32 %v324, %v326
        %v328 = vadd.f32 %v324, %v327
        %vm329 = vweird.f32 %v323
        %vm330 = vweird.f32 %v324
        %vm331 = vmor %vm329, %vm330
        %v332 = vsel %vm331, %v324, %v328
        %v333 = vand.u32 2147483647, %v323
        %vm334 = vcmp.eq.f32.partialorder %v333, 8.507059e+37
        %v335 = vand.u32 %v323, 2147483648
        %v336 = vor.u32 1.1754944e-38, %v335
        %v337 = vsel %vm334, %v336, %v332
        %v338 = vmul.f32 %v320, %v337
        %v339 = vpack.c.bf16 %v338, %v338
        %340 = vrot.lane.b32.xlu0 %v291, 64
        %v341 = vpop.permute.xlu0 %340
        %v343 = vsel %vm294, %v339, 0
        %vm345 = vcmask 1043456
        %v347 = vsel %vm345, %v341, 0
        %349 = vmatpush.bf16.msra.mxu0 0
        %350 = vmatpush.bf16.msra.mxu0 0
        %351 = vmatpush.bf16.msra.mxu0 0
        %352 = vmatpush.bf16.msra.mxu0 0
        %353 = vmatpush.bf16.msra.mxu0 0
        %354 = vmatpush.bf16.msra.mxu0 0
        %355 = vmatpush.bf16.msra.mxu0 0
        %356 = vmatpush.bf16.msra.mxu0 %v347
        %357 = vmatmul.bf16.gmra.mxu0 %v343
        %v358 = vpop.f32.mrf.mxu0
        %v359 = vadd.f32 0.0, %v358
        %v360 = vpop.f32.mrf.mxu0
        %361 = vdwg.mxu0
        %v362 = vpack.c.bf16 %v359, %v359
        %363 = vrot.lane.b32.xlu0 %v291, 120
        %v364 = vpop.permute.xlu0 %363
        %365 = vrot.lane.b32.xlu0 %v291, 88
        %v366 = vpop.permute.xlu0 %365
        %v368 = vsel %vm294, %v364, 0
        %v371 = vsel %vm294, %v366, 0
        %373 = vmatpush.bf16.xpose.msra.mxu0 0
        %374 = vmatpush.bf16.xpose.msra.mxu0 0
        %375 = vmatpush.bf16.xpose.msra.mxu0 0
        %376 = vmatpush.bf16.xpose.msra.mxu0 0
        %377 = vmatpush.bf16.xpose.msra.mxu0 0
        %378 = vmatpush.bf16.xpose.msra.mxu0 0
        %379 = vmatpush.bf16.xpose.msra.mxu0 0
        %380 = vmatpush.bf16.xpose.msra.mxu0 %v371
        %381 = vmatmul.bf16.gmra.mxu0 %v368
        %v382 = vpop.f32.mrf.mxu0
        %v383 = vadd.f32 0.0, %v382
        %v384 = vpop.f32.mrf.mxu0
        %385 = vdwg.mxu0
        %v386 = vmul.f32 %v383, 0.35355338
        %v387 = vsel %vm294, %v386, -inf
        %388 = vmax.xlane.f32.xlu0 %v387
        %v389 = vpop.xlane.xlu0 %388
        %v390 = vsub.f32 %v386, %v389
        %v391 = vmul.f32 %v390, 1.442695
        %v392 = vpow.pop %v391
        %v393 = vsel %vm294, %v392, 0.0
        %394 = vadd.xlane.f32.xlu0 %v393
        %v395 = vpop.xlane.xlu0 %394
        %v396 = vrcp.pop %v395
        %v397 = vmul.f32 %v395, %v396
        %v398 = vsub.f32 1.0, %v397
        %v399 = vmul.f32 %v396, %v398
        %v400 = vadd.f32 %v396, %v399
        %vm401 = vweird.f32 %v395
        %vm402 = vweird.f32 %v396
        %vm403 = vmor %vm401, %vm402
        %v404 = vsel %vm403, %v396, %v400
        %v405 = vand.u32 2147483647, %v395
        %vm406 = vcmp.eq.f32.partialorder %v405, 8.507059e+37
        %v407 = vand.u32 %v395, 2147483648
        %v408 = vor.u32 1.1754944e-38, %v407
        %v409 = vsel %vm406, %v408, %v404
        %v410 = vmul.f32 %v392, %v409
        %v411 = vpack.c.bf16 %v410, %v410
        %412 = vrot.lane.b32.xlu0 %v291, 56
        %v413 = vpop.permute.xlu0 %412
        %v415 = vsel %vm294, %v411, 0
        %v418 = vsel %vm345, %v413, 0
        %420 = vmatpush.bf16.msra.mxu0 0
        %421 = vmatpush.bf16.msra.mxu0 0
        %422 = vmatpush.bf16.msra.mxu0 0
        %423 = vmatpush.bf16.msra.mxu0 0
        %424 = vmatpush.bf16.msra.mxu0 0
        %425 = vmatpush.bf16.msra.mxu0 0
        %426 = vmatpush.bf16.msra.mxu0 0
        %427 = vmatpush.bf16.msra.mxu0 %v418
        %428 = vmatmul.bf16.gmra.mxu0 %v415
        %v429 = vpop.f32.mrf.mxu0
        %v430 = vadd.f32 0.0, %v429
        %v431 = vpop.f32.mrf.mxu0
        %432 = vdwg.mxu0
        %v433 = vpack.c.bf16 %v430, %v430
        %v435 = vsel %vm294, %v433, 0
        %v438 = vsel %vm345, %v256, 0
        %440 = vmatpush.bf16.msra.mxu0 0
        %441 = vmatpush.bf16.msra.mxu0 0
        %442 = vmatpush.bf16.msra.mxu0 0
        %443 = vmatpush.bf16.msra.mxu0 0
        %444 = vmatpush.bf16.msra.mxu0 0
        %445 = vmatpush.bf16.msra.mxu0 0
        %446 = vmatpush.bf16.msra.mxu0 0
        %447 = vmatpush.bf16.msra.mxu0 %v438
        %448 = vmatmul.bf16.gmra.mxu0 %v435
        %v449 = vpop.f32.mrf.mxu0
        %v450 = vadd.f32 0.0, %v449
        %v451 = vpop.f32.mrf.mxu0
        %452 = vdwg.mxu0
        %v454 = vsel %vm294, %v362, 0
        %v457 = vsel %vm345, %v255, 0
        %459 = vmatpush.bf16.msra.mxu0 0
        %460 = vmatpush.bf16.msra.mxu0 0
        %461 = vmatpush.bf16.msra.mxu0 0
        %462 = vmatpush.bf16.msra.mxu0 0
        %463 = vmatpush.bf16.msra.mxu0 0
        %464 = vmatpush.bf16.msra.mxu0 0
        %465 = vmatpush.bf16.msra.mxu0 0
        %466 = vmatpush.bf16.msra.mxu0 %v457
        %467 = vmatmul.bf16.gmra.mxu0 %v454
        %v468 = vpop.f32.mrf.mxu0
        %v469 = vadd.f32 %v450, %v468
        %v470 = vpop.f32.mrf.mxu0
        %471 = vdwg.mxu0
        %472 = vrot.lane.b32.xlu0 %v291, 112
        %v473 = vpop.permute.xlu0 %472
        %474 = vrot.lane.b32.xlu0 %v291, 80
        %v475 = vpop.permute.xlu0 %474
        %v477 = vsel %vm294, %v473, 0
        %v480 = vsel %vm294, %v475, 0
        %482 = vmatpush.bf16.xpose.msra.mxu0 0
        %483 = vmatpush.bf16.xpose.msra.mxu0 0
        %484 = vmatpush.bf16.xpose.msra.mxu0 0
        %485 = vmatpush.bf16.xpose.msra.mxu0 0
        %486 = vmatpush.bf16.xpose.msra.mxu0 0
        %487 = vmatpush.bf16.xpose.msra.mxu0 0
        %488 = vmatpush.bf16.xpose.msra.mxu0 0
        %489 = vmatpush.bf16.xpose.msra.mxu0 %v480
        %490 = vmatmul.bf16.gmra.mxu0 %v477
        %v491 = vpop.f32.mrf.mxu0
        %v492 = vadd.f32 0.0, %v491
        %v493 = vpop.f32.mrf.mxu0
        %494 = vdwg.mxu0
        %v495 = vmul.f32 %v492, 0.35355338
        %v496 = vsel %vm294, %v495, -inf
        %497 = vmax.xlane.f32.xlu0 %v496
        %v498 = vpop.xlane.xlu0 %497
        %v499 = vsub.f32 %v495, %v498
        %v500 = vmul.f32 %v499, 1.442695
        %v501 = vpow.pop %v500
        %v502 = vsel %vm294, %v501, 0.0
        %503 = vadd.xlane.f32.xlu0 %v502
        %v504 = vpop.xlane.xlu0 %503
        %v505 = vrcp.pop %v504
        %v506 = vmul.f32 %v504, %v505
        %v507 = vsub.f32 1.0, %v506
        %v508 = vmul.f32 %v505, %v507
        %v509 = vadd.f32 %v505, %v508
        %vm510 = vweird.f32 %v504
        %vm511 = vweird.f32 %v505
        %vm512 = vmor %vm510, %vm511
        %v513 = vsel %vm512, %v505, %v509
        %v514 = vand.u32 2147483647, %v504
        %vm515 = vcmp.eq.f32.partialorder %v514, 8.507059e+37
        %v516 = vand.u32 %v504, 2147483648
        %v517 = vor.u32 1.1754944e-38, %v516
        %v518 = vsel %vm515, %v517, %v513
        %v519 = vmul.f32 %v501, %v518
        %v520 = vpack.c.bf16 %v519, %v519
        %521 = vrot.lane.b32.xlu0 %v291, 48
        %v522 = vpop.permute.xlu0 %521
        %v524 = vsel %vm294, %v520, 0
        %v527 = vsel %vm345, %v522, 0
        %529 = vmatpush.bf16.msra.mxu0 0
        %530 = vmatpush.bf16.msra.mxu0 0
        %531 = vmatpush.bf16.msra.mxu0 0
        %532 = vmatpush.bf16.msra.mxu0 0
        %533 = vmatpush.bf16.msra.mxu0 0
        %534 = vmatpush.bf16.msra.mxu0 0
        %535 = vmatpush.bf16.msra.mxu0 0
        %536 = vmatpush.bf16.msra.mxu0 %v527
        %537 = vmatmul.bf16.gmra.mxu0 %v524
        %v538 = vpop.f32.mrf.mxu0
        %v539 = vadd.f32 0.0, %v538
        %v540 = vpop.f32.mrf.mxu0
        %541 = vdwg.mxu0
        %v542 = vpack.c.bf16 %v539, %v539
        %v544 = vsel %vm294, %v542, 0
        %v547 = vsel %vm345, %v257, 0
        %549 = vmatpush.bf16.msra.mxu0 0
        %550 = vmatpush.bf16.msra.mxu0 0
        %551 = vmatpush.bf16.msra.mxu0 0
        %552 = vmatpush.bf16.msra.mxu0 0
        %553 = vmatpush.bf16.msra.mxu0 0
        %554 = vmatpush.bf16.msra.mxu0 0
        %555 = vmatpush.bf16.msra.mxu0 0
        %556 = vmatpush.bf16.msra.mxu0 %v547
        %557 = vmatmul.bf16.gmra.mxu0 %v544
        %v558 = vpop.f32.mrf.mxu0
        %v559 = vadd.f32 0.0, %v558
        %v560 = vpop.f32.mrf.mxu0
        %561 = vdwg.mxu0
        %v562 = vadd.f32 %v469, %v559
        %563 = vrot.lane.b32.xlu0 %v291, 104
        %v564 = vpop.permute.xlu0 %563
        %565 = vrot.lane.b32.xlu0 %v291, 72
        %v566 = vpop.permute.xlu0 %565
        %v568 = vsel %vm294, %v564, 0
        %v571 = vsel %vm294, %v566, 0
        %573 = vmatpush.bf16.xpose.msra.mxu0 0
        %574 = vmatpush.bf16.xpose.msra.mxu0 0
        %575 = vmatpush.bf16.xpose.msra.mxu0 0
        %576 = vmatpush.bf16.xpose.msra.mxu0 0
        %577 = vmatpush.bf16.xpose.msra.mxu0 0
        %578 = vmatpush.bf16.xpose.msra.mxu0 0
        %579 = vmatpush.bf16.xpose.msra.mxu0 0
        %580 = vmatpush.bf16.xpose.msra.mxu0 %v571
        %581 = vmatmul.bf16.gmra.mxu0 %v568
        %v582 = vpop.f32.mrf.mxu0
        %v583 = vadd.f32 0.0, %v582
        %v584 = vpop.f32.mrf.mxu0
        %585 = vdwg.mxu0
        %v586 = vmul.f32 %v583, 0.35355338
        %v587 = vsel %vm294, %v586, -inf
        %588 = vmax.xlane.f32.xlu0 %v587
        %v589 = vpop.xlane.xlu0 %588
        %v590 = vsub.f32 %v586, %v589
        %v591 = vmul.f32 %v590, 1.442695
        %v592 = vpow.pop %v591
        %v593 = vsel %vm294, %v592, 0.0
        %594 = vadd.xlane.f32.xlu0 %v593
        %v595 = vpop.xlane.xlu0 %594
        %v596 = vrcp.pop %v595
        %v597 = vmul.f32 %v595, %v596
        %v598 = vsub.f32 1.0, %v597
        %v599 = vmul.f32 %v596, %v598
        %v600 = vadd.f32 %v596, %v599
        %vm601 = vweird.f32 %v595
        %vm602 = vweird.f32 %v596
        %vm603 = vmor %vm601, %vm602
        %v604 = vsel %vm603, %v596, %v600
        %v605 = vand.u32 2147483647, %v595
        %vm606 = vcmp.eq.f32.partialorder %v605, 8.507059e+37
        %v607 = vand.u32 %v595, 2147483648
        %v608 = vor.u32 1.1754944e-38, %v607
        %v609 = vsel %vm606, %v608, %v604
        %v610 = vmul.f32 %v592, %v609
        %v611 = vpack.c.bf16 %v610, %v610
        %612 = vrot.lane.b32.xlu0 %v291, 40
        %v613 = vpop.permute.xlu0 %612
        %v615 = vsel %vm294, %v611, 0
        %v618 = vsel %vm345, %v613, 0
        %620 = vmatpush.bf16.msra.mxu0 0
        %621 = vmatpush.bf16.msra.mxu0 0
        %622 = vmatpush.bf16.msra.mxu0 0
        %623 = vmatpush.bf16.msra.mxu0 0
        %624 = vmatpush.bf16.msra.mxu0 0
        %625 = vmatpush.bf16.msra.mxu0 0
        %626 = vmatpush.bf16.msra.mxu0 0
        %627 = vmatpush.bf16.msra.mxu0 %v618
        %628 = vmatmul.bf16.gmra.mxu0 %v615
        %v629 = vpop.f32.mrf.mxu0
        %v630 = vadd.f32 0.0, %v629
        %v631 = vpop.f32.mrf.mxu0
        %632 = vdwg.mxu0
        %v633 = vpack.c.bf16 %v630, %v630
        %v635 = vsel %vm294, %v633, 0
        %v638 = vsel %vm345, %v258, 0
        %640 = vmatpush.bf16.msra.mxu0 0
        %641 = vmatpush.bf16.msra.mxu0 0
        %642 = vmatpush.bf16.msra.mxu0 0
        %643 = vmatpush.bf16.msra.mxu0 0
        %644 = vmatpush.bf16.msra.mxu0 0
        %645 = vmatpush.bf16.msra.mxu0 0
        %646 = vmatpush.bf16.msra.mxu0 0
        %647 = vmatpush.bf16.msra.mxu0 %v638
        %648 = vmatmul.bf16.gmra.mxu0 %v635
        %v649 = vpop.f32.mrf.mxu0
        %v650 = vadd.f32 0.0, %v649
        %v651 = vpop.f32.mrf.mxu0
        %652 = vdwg.mxu0
        %v653 = vadd.f32 %v562, %v650
        %v654 = vld [vmem:[%s3] sm:$0x1]
        %v656 = vperm.slane %v654, 0
        %v658 = vadd.f32 %v653, %v656
        %659 = vst.msk [vmem:[%s247] sm:$0xff] %vm271, %v658
        %s660 = sand.u32 %s119, 1
        %s661 = scalar_lea.sflag [#allocation4], %s660
        %s662 = sand.u32 %s119, 1
        %s663 = smul.addr %s662, 8
        %s664 = scalar_lea.vmem [#allocation8], %s663
        // Predicated region
        $region49: #{tpu_custom_call.1} parent=35 // pred_check
          %p665 = pneg %p129
        $region50: #{tpu_custom_call.1} parent=35 // pred_check_branch
          %667 = sbr.rel (%p665) target = $region52
        $region51: #{tpu_custom_call.1} parent=35 // pred_region
          %669 = vsyncadd %s661, 0
          %s670 = smul.addr %s22, 8
          %s671 = scalar_lea.hbm %s4, %s670
          %s673 = sshll.u32 %s664, 4
          %s674 = int_to_ptr.vmem [resolvable:$true] %s673
          %s675 = sshll.u32 %s671, 4
          %s676 = int_to_ptr.hbm [resolvable:$true] %s675
          %678 = dma.vmem_to_hbm [thread:$0]  %s674, 128, %s676, %s661
        $region52: #{tpu_custom_call.1} parent=35 // pred_fallthru
          _
      $region36: #{tpu_custom_call.1} parent=5 // pred_fallthru
        _
      %p679 = scmp.le.s32.totalorder 2, %s17
      // Predicated region
      $region53: #{tpu_custom_call.1} parent=5 // pred_check
        %p680 = pneg %p679
      $region54: #{tpu_custom_call.1} parent=5 // pred_check_branch
        %682 = sbr.rel (%p680) target = $region56
      $region55: #{tpu_custom_call.1} parent=5 // pred_region
        %s683 = ssub.s32 %s17, 2
        // Predicated region
        $region57: #{tpu_custom_call.1} parent=55 // pred_check
          %p684 = pneg %p135
        $region58: #{tpu_custom_call.1} parent=55 // pred_check_branch
          %686 = sbr.rel (%p684) target = $region60
        $region59: #{tpu_custom_call.1} parent=55 // pred_region
          %s687 = sand.u32 %s120, 1
          %s688 = scalar_lea.sflag [#allocation4], %s687
          %s689 = sand.u32 %s120, 1
          %s690 = smul.addr %s689, 8
          %s691 = scalar_lea.vmem [#allocation8], %s690
          %693 = dma.done %s688, 128
        $region60: #{tpu_custom_call.1} parent=55 // pred_fallthru
          _
      $region56: #{tpu_custom_call.1} parent=5 // pred_fallthru
        _
    $region6: #{tpu_custom_call.1} parent=1 // loop_footer
      %s21 = sadd.s32 1, %s17
    $region7: #{tpu_custom_call.1} parent=1 // loop_footer_branch
      %16 = sbr.rel target = $region3
    $region8: #{tpu_custom_call.1} parent=1 // loop_exit
      _
    %694 = vsyncpa [#allocation3], 1
    %s695 = scalar_lea.sflag [#allocation3], 1
    %696 = vsyncpa %s695, 1
    %697 = vsyncpa [#allocation6], 1
    %698 = vsyncpa [#allocation4], 1
    %s699 = scalar_lea.sflag [#allocation4], 1
    %700 = vsyncpa %s699, 1

</llo_original>
